<compile_context>
chip_gen: v7x
topology: tpu7x:2x2x1
jax: 0.10.0
libtpu: 0.0.40
codegen_flags: <defaults>
</compile_context>

<pallas_src>
import functools

import jax
import jax.numpy as jnp
from jax import lax
from jax.experimental import pallas as pl
from jax.experimental.pallas import tpu as pltpu


# ---------------------------------------------------------------------------
# 1x1 conv (+ folded BN + ReLU):  (M, Cin) @ (Cin, Cout), tiled over rows.
# ---------------------------------------------------------------------------
def _pointwise_kernel(x_ref, w_ref, s_ref, b_ref, o_ref):
    acc = jnp.dot(x_ref[...], w_ref[...], preferred_element_type=jnp.float32)
    acc = acc * s_ref[...] + b_ref[...]
    o_ref[...] = jnp.maximum(acc, 0.0).astype(o_ref.dtype)


def _row_tile(m, tm):
    tm = min(tm, m)
    if tm != m:
        tm = max(8, (tm // 8) * 8)   # keep the row tile sublane-aligned
    return tm


def pointwise_conv_bn_relu(x2d, w, scale, bias, *, tm=256):
    m, cin = x2d.shape
    cout = w.shape[1]
    tm = _row_tile(m, tm)
    grid = (pl.cdiv(m, tm),)
    s2 = scale.reshape(1, cout).astype(jnp.float32)
    b2 = bias.reshape(1, cout).astype(jnp.float32)
    itemsize = x2d.dtype.itemsize
    cost = pl.CostEstimate(
        flops=2 * m * cin * cout,
        transcendentals=0,
        bytes_accessed=(m * cin + cin * cout + 2 * cout + m * cout) * itemsize,
    )
    return pl.pallas_call(
        _pointwise_kernel,
        out_shape=jax.ShapeDtypeStruct((m, cout), x2d.dtype),
        grid_spec=pltpu.PrefetchScalarGridSpec(
            num_scalar_prefetch=0,
            grid=grid,
            in_specs=[
                pl.BlockSpec((tm, cin), lambda i: (i, 0)),
                pl.BlockSpec((cin, cout), lambda i: (0, 0)),
                pl.BlockSpec((1, cout), lambda i: (0, 0)),
                pl.BlockSpec((1, cout), lambda i: (0, 0)),
            ],
            out_specs=pl.BlockSpec((tm, cout), lambda i: (i, 0)),
        ),
        compiler_params=pltpu.CompilerParams(dimension_semantics=("parallel",)),
        cost_estimate=cost,
    )(x2d, w, s2, b2)


# ---------------------------------------------------------------------------
# cv2: 1x1 conv over the channel-concat of several pieces, without ever
# materializing the concat — per-piece matmuls against weight row slices.
# ---------------------------------------------------------------------------
def _concat_pointwise_kernel(*refs, piece_channels):
    k = len(piece_channels)
    piece_refs = refs[:k]
    w_ref, s_ref, b_ref, o_ref = refs[k:k + 4]
    acc = None
    off = 0
    for p_ref, ch in zip(piece_refs, piece_channels):
        part = jnp.dot(p_ref[...], w_ref[off:off + ch, :],
                       preferred_element_type=jnp.float32)
        acc = part if acc is None else acc + part
        off += ch
    acc = acc * s_ref[...] + b_ref[...]
    o_ref[...] = jnp.maximum(acc, 0.0).astype(o_ref.dtype)


def concat_pointwise_conv_bn_relu(pieces, w, scale, bias, *, tm=256):
    m = pieces[0].shape[0]
    piece_channels = tuple(int(p.shape[1]) for p in pieces)
    cin = int(sum(piece_channels))
    assert w.shape[0] == cin
    cout = w.shape[1]
    tm = _row_tile(m, tm)
    grid = (pl.cdiv(m, tm),)
    s2 = scale.reshape(1, cout).astype(jnp.float32)
    b2 = bias.reshape(1, cout).astype(jnp.float32)
    itemsize = pieces[0].dtype.itemsize
    cost = pl.CostEstimate(
        flops=2 * m * cin * cout,
        transcendentals=0,
        bytes_accessed=(m * cin + cin * cout + 2 * cout + m * cout) * itemsize,
    )
    in_specs = [pl.BlockSpec((tm, ch), lambda i: (i, 0)) for ch in piece_channels]
    in_specs += [
        pl.BlockSpec((cin, cout), lambda i: (0, 0)),
        pl.BlockSpec((1, cout), lambda i: (0, 0)),
        pl.BlockSpec((1, cout), lambda i: (0, 0)),
    ]
    kernel = functools.partial(_concat_pointwise_kernel,
                               piece_channels=piece_channels)
    return pl.pallas_call(
        kernel,
        out_shape=jax.ShapeDtypeStruct((m, cout), pieces[0].dtype),
        grid_spec=pltpu.PrefetchScalarGridSpec(
            num_scalar_prefetch=0,
            grid=grid,
            in_specs=in_specs,
            out_specs=pl.BlockSpec((tm, cout), lambda i: (i, 0)),
        ),
        compiler_params=pltpu.CompilerParams(dimension_semantics=("parallel",)),
        cost_estimate=cost,
    )(*pieces, w, s2, b2)


# ---------------------------------------------------------------------------
# Fused Bottleneck: two 3x3 'same' convs (+BN+ReLU) and optional residual add,
# one image per grid step. The intermediate activation stays in VMEM.
# ---------------------------------------------------------------------------
def _bottleneck_kernel(xpad_ref, w1_ref, s1_ref, b1_ref, w2_ref, s2_ref, b2_ref,
                       o_ref, tpad_ref, *, h, w, c, shortcut):
    # First 3x3 conv + BN + ReLU: 9 shifted (h*w, c) x (c, c) MXU matmuls.
    acc = jnp.zeros((h * w, c), jnp.float32)
    for dy in range(3):
        for dx in range(3):
            tap = xpad_ref[dy:dy + h, dx:dx + w, :].reshape(h * w, c)
            acc = acc + jnp.dot(tap, w1_ref[dy, dx],
                                preferred_element_type=jnp.float32)
    t = jnp.maximum(acc * s1_ref[...] + b1_ref[...], 0.0)

    # Stage t into a zero-padded VMEM scratch so the second conv sees 'same'
    # zero padding without an HBM round trip of the intermediate.
    tpad_ref[...] = jnp.zeros_like(tpad_ref)
    tpad_ref[1:h + 1, 1:w + 1, :] = t.reshape(h, w, c)

    # Second 3x3 conv + BN + ReLU (+ residual).
    acc2 = jnp.zeros((h * w, c), jnp.float32)
    for dy in range(3):
        for dx in range(3):
            tap = tpad_ref[dy:dy + h, dx:dx + w, :].reshape(h * w, c)
            acc2 = acc2 + jnp.dot(tap, w2_ref[dy, dx],
                                  preferred_element_type=jnp.float32)
    out = jnp.maximum(acc2 * s2_ref[...] + b2_ref[...], 0.0)
    if shortcut:
        out = out + xpad_ref[1:h + 1, 1:w + 1, :].reshape(h * w, c).astype(jnp.float32)
    o_ref[...] = out.reshape(h, w, c).astype(o_ref.dtype)


def bottleneck_3x3(y, w1, s1, b1, w2, s2, b2, *, shortcut):
    n, h, w, c = y.shape
    ypad = jnp.pad(y, ((0, 0), (1, 1), (1, 1), (0, 0)))
    itemsize = y.dtype.itemsize
    cost = pl.CostEstimate(
        flops=2 * 2 * 9 * n * h * w * c * c,
        transcendentals=0,
        bytes_accessed=(ypad.size + 2 * 9 * c * c + 4 * c + y.size) * itemsize,
    )
    kernel = functools.partial(_bottleneck_kernel, h=h, w=w, c=c,
                               shortcut=shortcut)

    def sb(v):
        return v.reshape(1, c).astype(jnp.float32)

    # TODO(synk): for large feature maps, tile H (with a 1-row halo) instead of
    # one full (H+2, W+2, C) image per grid step, and raise vmem_limit_bytes
    # (v7x only has 64 MiB VMEM).
    return pl.pallas_call(
        kernel,
        out_shape=jax.ShapeDtypeStruct((n, h, w, c), y.dtype),
        grid_spec=pltpu.PrefetchScalarGridSpec(
            num_scalar_prefetch=0,
            grid=(n,),
            in_specs=[
                pl.BlockSpec((None, h + 2, w + 2, c), lambda i: (i, 0, 0, 0)),
                pl.BlockSpec((3, 3, c, c), lambda i: (0, 0, 0, 0)),
                pl.BlockSpec((1, c), lambda i: (0, 0)),
                pl.BlockSpec((1, c), lambda i: (0, 0)),
                pl.BlockSpec((3, 3, c, c), lambda i: (0, 0, 0, 0)),
                pl.BlockSpec((1, c), lambda i: (0, 0)),
                pl.BlockSpec((1, c), lambda i: (0, 0)),
            ],
            out_specs=pl.BlockSpec((None, h, w, c), lambda i: (i, 0, 0, 0)),
            scratch_shapes=[pltpu.VMEM((h + 2, w + 2, c), jnp.float32)],
        ),
        compiler_params=pltpu.CompilerParams(dimension_semantics=("parallel",)),
        cost_estimate=cost,
    )(ypad, w1, sb(s1), sb(b1), w2, sb(s2), sb(b2))


# ---------------------------------------------------------------------------
# C2f forward (NCHW in / NCHW out, like the PyTorch module).
# ---------------------------------------------------------------------------
def c2f_forward(x_nchw, params, *, shortcut=False):
    n_batch, c1, h, w = x_nchw.shape
    c = params["c"]
    x = jnp.transpose(x_nchw, (0, 2, 3, 1))          # NHWC: channels on lanes
    m = n_batch * h * w

    # cv1 (1x1 conv + BN + ReLU)
    t2d = pointwise_conv_bn_relu(
        x.reshape(m, c1), params["cv1_w"], params["cv1_s"], params["cv1_b"])

    pieces = [t2d]                                   # covers [y0 | y1] channels
    y = t2d.reshape(n_batch, h, w, 2 * c)[..., c:]   # y1 feeds the bottlenecks
    for blk in params["m"]:
        y = bottleneck_3x3(y, blk["w1"], blk["s1"], blk["b1"],
                           blk["w2"], blk["s2"], blk["b2"], shortcut=shortcut)
        pieces.append(y.reshape(m, c))

    # cv2 (1x1 conv + BN + ReLU) with the channel concat folded into the kernel.
    out2d = concat_pointwise_conv_bn_relu(
        pieces, params["cv2_w"], params["cv2_s"], params["cv2_b"])
    c2 = params["cv2_w"].shape[1]
    out = out2d.reshape(n_batch, h, w, c2)
    return jnp.transpose(out, (0, 3, 1, 2))          # back to NCHW


# ---------------------------------------------------------------------------
# Pure-JAX reference (same math, XLA ops) for validation.
# ---------------------------------------------------------------------------
def _conv3x3_bn_relu_ref(x, w_hwio, scale, bias):
    y = lax.conv_general_dilated(
        x, w_hwio, window_strides=(1, 1), padding="SAME",
        dimension_numbers=("NHWC", "HWIO", "NHWC"))
    return jnp.maximum(y * scale + bias, 0.0)


def c2f_reference(x_nchw, params, *, shortcut=False):
    c = params["c"]
    x = jnp.transpose(x_nchw, (0, 2, 3, 1)).astype(jnp.float32)
    t = jnp.maximum(
        jnp.einsum("nhwc,cd->nhwd", x, params["cv1_w"]) * params["cv1_s"]
        + params["cv1_b"], 0.0)
    ys = [t[..., :c], t[..., c:]]
    for blk in params["m"]:
        yin = ys[-1]
        h1 = _conv3x3_bn_relu_ref(yin, blk["w1"], blk["s1"], blk["b1"])
        h2 = _conv3x3_bn_relu_ref(h1, blk["w2"], blk["s2"], blk["b2"])
        ys.append(yin + h2 if shortcut else h2)
    cat = jnp.concatenate(ys, axis=-1)
    out = jnp.maximum(
        jnp.einsum("nhwc,cd->nhwd", cat, params["cv2_w"]) * params["cv2_s"]
        + params["cv2_b"], 0.0)
    return jnp.transpose(out, (0, 3, 1, 2))


# ---------------------------------------------------------------------------
# Parameter construction (Conv weights + inference BN folded to scale/bias).
# ---------------------------------------------------------------------------
def _fold_bn(gamma, beta, mean, var, eps=1e-5):
    scale = gamma / jnp.sqrt(var + eps)
    bias = beta - mean * scale
    return scale, bias


def _bn_params(key, cout):
    kg, kb, km, kv = jax.random.split(key, 4)
    gamma = 1.0 + 0.1 * jax.random.normal(kg, (cout,), jnp.float32)
    beta = 0.1 * jax.random.normal(kb, (cout,), jnp.float32)
    mean = 0.1 * jax.random.normal(km, (cout,), jnp.float32)
    var = 0.5 + jax.random.uniform(kv, (cout,), jnp.float32)
    return _fold_bn(gamma, beta, mean, var)


def make_c2f_params(key, c1, c2, n, e=0.5):
    c = int(c2 * e)
    keys = jax.random.split(key, 2 + n)
    cv1_w = jax.random.normal(keys[0], (c1, 2 * c), jnp.float32) / jnp.sqrt(c1)
    cv1_s, cv1_b = _bn_params(jax.random.fold_in(keys[0], 1), 2 * c)
    cv2_w = (jax.random.normal(keys[1], ((2 + n) * c, c2), jnp.float32)
             / jnp.sqrt((2 + n) * c))
    cv2_s, cv2_b = _bn_params(jax.random.fold_in(keys[1], 1), c2)
    blocks = []
    for i in range(n):
        k1, k2, k3, k4 = jax.random.split(keys[2 + i], 4)
        w1 = jax.random.normal(k1, (3, 3, c, c), jnp.float32) / jnp.sqrt(9 * c)
        s1, b1 = _bn_params(k2, c)
        w2 = jax.random.normal(k3, (3, 3, c, c), jnp.float32) / jnp.sqrt(9 * c)
        s2, b2 = _bn_params(k4, c)
        blocks.append(dict(w1=w1, s1=s1, b1=b1, w2=w2, s2=s2, b2=b2))
    return dict(c=c, cv1_w=cv1_w, cv1_s=cv1_s, cv1_b=cv1_b,
                cv2_w=cv2_w, cv2_s=cv2_s, cv2_b=cv2_b, m=blocks)


if __name__ == "__main__":
    key = jax.random.PRNGKey(0)
    kx, kp = jax.random.split(key)

    n_batch, c1, c2_out, h, w = 2, 4, 8, 16, 16
    n_bottlenecks = 2
    shortcut = True   # Bottleneck has c_in == c_out, so the residual is active

    x = jax.random.normal(kx, (n_batch, c1, h, w), dtype=jnp.float32)
    params = make_c2f_params(kp, c1, c2_out, n_bottlenecks)

    out = jax.block_until_ready(c2f_forward(x, params, shortcut=shortcut))
    ref = c2f_reference(x, params, shortcut=shortcut)

    assert out.shape == (n_batch, c2_out, h, w), out.shape
    assert bool(jnp.all(jnp.isfinite(out)))
    max_err = float(jnp.max(jnp.abs(out - ref)))
    assert jnp.allclose(out, ref, rtol=5e-2, atol=5e-2), max_err

    print("KERNEL_OK")
</pallas_src>

<mosaic_0001>
module attributes {stable_mosaic.version = 11 : i64} {
  func.func @_pointwise_kernel(%arg0: i32, %arg1: memref<256x4xf32, #tpu.memory_space<vmem>>, %arg2: memref<4x8xf32, #tpu.memory_space<vmem>>, %arg3: memref<1x8xf32, #tpu.memory_space<vmem>>, %arg4: memref<1x8xf32, #tpu.memory_space<vmem>>, %arg5: memref<256x8xf32, #tpu.memory_space<vmem>>) attributes {dimension_semantics = [#tpu.dimension_semantics<parallel>], iteration_bounds = array<i64: 2>, scalar_prefetch = 0 : i64, scratch_operands = 0 : i64, tpu.core_type = #tpu.core_type<tc>, window_params = [{transform_indices = @transform_0, window_bounds = array<i64: 256, 4>}, {pipeline_mode = #tpu.pipeline_mode<synchronous>, transform_indices = @transform_1, window_bounds = array<i64: 4, 8>}, {pipeline_mode = #tpu.pipeline_mode<synchronous>, transform_indices = @transform_2, window_bounds = array<i64: 1, 8>}, {pipeline_mode = #tpu.pipeline_mode<synchronous>, transform_indices = @transform_3, window_bounds = array<i64: 1, 8>}, {transform_indices = @transform_4, window_bounds = array<i64: 256, 8>}]} {
    %c0 = arith.constant 0 : index
    %c0_0 = arith.constant 0 : index
    %0 = vector.load %arg1[%c0, %c0_0] : memref<256x4xf32, #tpu.memory_space<vmem>>, vector<256x4xf32>
    %c0_1 = arith.constant 0 : index
    %c0_2 = arith.constant 0 : index
    %1 = vector.load %arg2[%c0_1, %c0_2] : memref<4x8xf32, #tpu.memory_space<vmem>>, vector<4x8xf32>
    %cst = arith.constant dense<0.000000e+00> : vector<256x8xf32>
    %2 = tpu.matmul %0, %1, %cst {dimension_numbers = #tpu.dot_dimension_numbers<[1], [0], [0], [1], [0, 0, 1, 1], [], []>} : vector<256x4xf32>, vector<4x8xf32>, vector<256x8xf32> -> vector<256x8xf32>
    %c0_3 = arith.constant 0 : index
    %c0_4 = arith.constant 0 : index
    %3 = vector.load %arg3[%c0_3, %c0_4] : memref<1x8xf32, #tpu.memory_space<vmem>>, vector<1x8xf32>
    %4 = vector.broadcast %3 : vector<1x8xf32> to vector<256x8xf32>
    %5 = arith.mulf %2, %4 : vector<256x8xf32>
    %c0_5 = arith.constant 0 : index
    %c0_6 = arith.constant 0 : index
    %6 = vector.load %arg4[%c0_5, %c0_6] : memref<1x8xf32, #tpu.memory_space<vmem>>, vector<1x8xf32>
    %7 = vector.broadcast %6 : vector<1x8xf32> to vector<256x8xf32>
    %8 = arith.addf %5, %7 : vector<256x8xf32>
    %cst_7 = arith.constant 0.000000e+00 : f32
    %9 = vector.broadcast %cst_7 : f32 to vector<256x8xf32>
    %10 = arith.maximumf %8, %9 : vector<256x8xf32>
    %c0_8 = arith.constant 0 : index
    %c0_9 = arith.constant 0 : index
    %11 = vector.load %arg5[%c0_8, %c0_9] : memref<256x8xf32, #tpu.memory_space<vmem>>, vector<256x8xf32>
    tpu.vector_store %arg5[%c0_8, %c0_9], %10 {strides = array<i32>} : memref<256x8xf32, #tpu.memory_space<vmem>>, vector<256x8xf32>,
    return
  }
  func.func @transform_0(%arg0: i32) -> (i32, i32) {
    %c0_i32 = arith.constant 0 : i32
    %c0_i32_0 = arith.constant 0 : i32
    return %arg0, %c0_i32 : i32, i32
  }
  func.func @transform_1(%arg0: i32) -> (i32, i32) {
    %c0_i32 = arith.constant 0 : i32
    %c0_i32_0 = arith.constant 0 : i32
    %c0_i32_1 = arith.constant 0 : i32
    return %c0_i32, %c0_i32_0 : i32, i32
  }
  func.func @transform_2(%arg0: i32) -> (i32, i32) {
    %c0_i32 = arith.constant 0 : i32
    %c0_i32_0 = arith.constant 0 : i32
    %c0_i32_1 = arith.constant 0 : i32
    return %c0_i32, %c0_i32_0 : i32, i32
  }
  func.func @transform_3(%arg0: i32) -> (i32, i32) {
    %c0_i32 = arith.constant 0 : i32
    %c0_i32_0 = arith.constant 0 : i32
    %c0_i32_1 = arith.constant 0 : i32
    return %c0_i32, %c0_i32_0 : i32, i32
  }
  func.func @transform_4(%arg0: i32) -> (i32, i32) {
    %c0_i32 = arith.constant 0 : i32
    %c0_i32_0 = arith.constant 0 : i32
    return %arg0, %c0_i32 : i32, i32
  }
}

</mosaic_0001>

<llo_original>
// kernel: tpu_custom_call.1
$region0: #{tpu_custom_call.1}
  #allocation0 [shape = 'u32[]', space=smem, size = 0x4, offset = 0x4, fixed_abs, tag = 'smem constant byte address 0x4 - core index']
  #allocation1 [shape = 'u32[144,128]{1,0:T(1,128)}', space=vmem, size = 0x12000, scoped, tag = 'internal scratch']
  %s0 = inlined_call_operand.vmem [shape: f32[512,4], index: 0, kind: input, shape index: {}]
  %s1 = inlined_call_operand.vmem [shape: f32[4,8], index: 1, kind: input, shape index: {}]
  %s2 = inlined_call_operand.vmem [shape: f32[1,8], index: 2, kind: input, shape index: {}]
  %s3 = inlined_call_operand.vmem [shape: f32[1,8], index: 3, kind: input, shape index: {}]
  %s4 = inlined_call_operand.vmem [shape: f32[512,8], index: 4, kind: output, shape index: {}]
  %s5 = sld [smem:[#allocation0]]
  $region49: #{tpu_custom_call.1} parent=0
    _
  %s7 = ssub.s32 1, %s5
  %s8 = scalar_select 0, %s7, %s5
  loop: start=0, step=1, limit=4
  $region2: #{tpu_custom_call.1} parent=0 // loop_pre_header
    _
  $region3: #{tpu_custom_call.1} parent=0 // loop_header
    %s10 = sphi 0, %s14
    %p11 = scmp.ge.s32.totalorder %s10, 4
    %s20 = sphi 0, %s22
    %s23 = sphi 0, %s20
    %s24 = sphi 0, %s23
    %s40 = sphi 0, %s24
    %s44 = sphi 0, %s44
    %s46 = sphi 0, %s44
    %s47 = sphi 0, %s46
    %s61 = sphi 0, %s47
    %s65 = sphi 0, %s65
    %s67 = sphi 0, %s65
    %s68 = sphi 0, %s67
    %s82 = sphi 0, %s68
    %s86 = sphi 0, %s86
    %s88 = sphi 0, %s86
    %s89 = sphi 0, %s88
    %s103 = sphi 0, %s89
    %s109 = sphi 0, %s111
    %s112 = sphi 0, %s109
    %s113 = sphi 0, %s112
    %s129 = sphi 0, %s113
  $region4: #{tpu_custom_call.1} parent=0 // loop_header_branch
    %13 = sbr.rel (%p11) target = $region8
  $region5: #{tpu_custom_call.1} parent=0 // loop_body
    %s15 = ssub.s32 %s10, 1
    %s16 = ssub.s32 %s10, 2
    %s17 = sadd.s32 %s10, 1
    %s18 = ssub.s32 %s10, %s17
    %p19 = scmp.eq.s32.totalorder %s18, 0
    %s21 = sadd.s32 %s20, 1
    %s22 = scalar_select %p19, %s20, %s21
    %p25 = pneg %p19
    %p26 = scmp.eq.s32.totalorder %s10, 1
    %p27 = por %p25, %p26
    %p28 = scmp.ne.s32.totalorder %s20, %s23
    %p29 = scmp.eq.s32.totalorder %s10, 0
    %p30 = por %p28, %p29
    %p31 = scmp.ne.s32.totalorder %s20, %s23
    %p32 = scmp.eq.s32.totalorder %s15, 1
    %p33 = por %p31, %p32
    %p34 = scmp.ne.s32.totalorder %s23, %s24
    %p35 = scmp.eq.s32.totalorder %s15, 0
    %p36 = por %p34, %p35
    %p37 = scmp.ne.s32.totalorder %s23, %s24
    %p38 = scmp.eq.s32.totalorder %s16, 1
    %p39 = por %p37, %p38
    %p41 = scmp.ne.s32.totalorder %s24, %s40
    %p42 = scmp.eq.s32.totalorder %s16, 0
    %p43 = por %p41, %p42
    %s45 = sadd.s32 %s44, 1
    %p48 = scmp.eq.s32.totalorder %s10, 1
    %p49 = scmp.ne.s32.totalorder %s44, %s46
    %p50 = scmp.eq.s32.totalorder %s10, 0
    %p51 = por %p49, %p50
    %p52 = scmp.ne.s32.totalorder %s44, %s46
    %p53 = scmp.eq.s32.totalorder %s15, 1
    %p54 = por %p52, %p53
    %p55 = scmp.ne.s32.totalorder %s46, %s47
    %p56 = scmp.eq.s32.totalorder %s15, 0
    %p57 = por %p55, %p56
    %p58 = scmp.ne.s32.totalorder %s46, %s47
    %p59 = scmp.eq.s32.totalorder %s16, 1
    %p60 = por %p58, %p59
    %p62 = scmp.ne.s32.totalorder %s47, %s61
    %p63 = scmp.eq.s32.totalorder %s16, 0
    %p64 = por %p62, %p63
    %s66 = sadd.s32 %s65, 1
    %p69 = scmp.eq.s32.totalorder %s10, 1
    %p70 = scmp.ne.s32.totalorder %s65, %s67
    %p71 = scmp.eq.s32.totalorder %s10, 0
    %p72 = por %p70, %p71
    %p73 = scmp.ne.s32.totalorder %s65, %s67
    %p74 = scmp.eq.s32.totalorder %s15, 1
    %p75 = por %p73, %p74
    %p76 = scmp.ne.s32.totalorder %s67, %s68
    %p77 = scmp.eq.s32.totalorder %s15, 0
    %p78 = por %p76, %p77
    %p79 = scmp.ne.s32.totalorder %s67, %s68
    %p80 = scmp.eq.s32.totalorder %s16, 1
    %p81 = por %p79, %p80
    %p83 = scmp.ne.s32.totalorder %s68, %s82
    %p84 = scmp.eq.s32.totalorder %s16, 0
    %p85 = por %p83, %p84
    %s87 = sadd.s32 %s86, 1
    %p90 = scmp.eq.s32.totalorder %s10, 1
    %p91 = scmp.ne.s32.totalorder %s86, %s88
    %p92 = scmp.eq.s32.totalorder %s10, 0
    %p93 = por %p91, %p92
    %p94 = scmp.ne.s32.totalorder %s86, %s88
    %p95 = scmp.eq.s32.totalorder %s15, 1
    %p96 = por %p94, %p95
    %p97 = scmp.ne.s32.totalorder %s88, %s89
    %p98 = scmp.eq.s32.totalorder %s15, 0
    %p99 = por %p97, %p98
    %p100 = scmp.ne.s32.totalorder %s88, %s89
    %p101 = scmp.eq.s32.totalorder %s16, 1
    %p102 = por %p100, %p101
    %p104 = scmp.ne.s32.totalorder %s89, %s103
    %p105 = scmp.eq.s32.totalorder %s16, 0
    %p106 = por %p104, %p105
    %s107 = ssub.s32 %s10, %s17
    %p108 = scmp.eq.s32.totalorder %s107, 0
    %s110 = sadd.s32 %s109, 1
    %s111 = scalar_select %p108, %s109, %s110
    %p114 = pneg %p108
    %p115 = scmp.eq.s32.totalorder %s10, 1
    %p116 = por %p114, %p115
    %p117 = scmp.ne.s32.totalorder %s109, %s112
    %p118 = scmp.eq.s32.totalorder %s10, 0
    %p119 = por %p117, %p118
    %p120 = scmp.ne.s32.totalorder %s109, %s112
    %p121 = scmp.eq.s32.totalorder %s15, 1
    %p122 = por %p120, %p121
    %p123 = scmp.ne.s32.totalorder %s112, %s113
    %p124 = scmp.eq.s32.totalorder %s15, 0
    %p125 = por %p123, %p124
    %p126 = scmp.ne.s32.totalorder %s112, %s113
    %p127 = scmp.eq.s32.totalorder %s16, 1
    %p128 = por %p126, %p127
    %p130 = scmp.ne.s32.totalorder %s113, %s129
    %p131 = scmp.eq.s32.totalorder %s16, 0
    %p132 = por %p130, %p131
    %p133 = scmp.le.s32.totalorder 1, %s10
    %p134 = scmp.lt.s32.totalorder %s10, 3
    %p135 = pnand %p133, %p134
    %p136 = pneg %p135
    // Predicated region
    $region9: #{tpu_custom_call.1} parent=5 // pred_check
      _
    $region10: #{tpu_custom_call.1} parent=5 // pred_check_branch
      %138 = sbr.rel (%p135) target = $region12
    $region11: #{tpu_custom_call.1} parent=5 // pred_region
      %s139 = ssub.s32 %s10, 1
      // Predicated region
      $region13: #{tpu_custom_call.1} parent=11 // pred_check
        %p140 = pneg %p57
      $region14: #{tpu_custom_call.1} parent=11 // pred_check_branch
        %142 = sbr.rel (%p140) target = $region16
      $region15: #{tpu_custom_call.1} parent=11 // pred_region
        _
      $region16: #{tpu_custom_call.1} parent=11 // pred_fallthru
        _
      // Predicated region
      $region17: #{tpu_custom_call.1} parent=11 // pred_check
        %p143 = pneg %p78
      $region18: #{tpu_custom_call.1} parent=11 // pred_check_branch
        %145 = sbr.rel (%p143) target = $region20
      $region19: #{tpu_custom_call.1} parent=11 // pred_region
        _
      $region20: #{tpu_custom_call.1} parent=11 // pred_fallthru
        _
      // Predicated region
      $region21: #{tpu_custom_call.1} parent=11 // pred_check
        %p146 = pneg %p99
      $region22: #{tpu_custom_call.1} parent=11 // pred_check_branch
        %148 = sbr.rel (%p146) target = $region24
      $region23: #{tpu_custom_call.1} parent=11 // pred_region
        _
      $region24: #{tpu_custom_call.1} parent=11 // pred_fallthru
        _
    $region12: #{tpu_custom_call.1} parent=5 // pred_fallthru
      _
    %p149 = scmp.lt.s32.totalorder %s10, 2
    // Predicated region
    $region25: #{tpu_custom_call.1} parent=5 // pred_check
      %p150 = pneg %p149
    $region26: #{tpu_custom_call.1} parent=5 // pred_check_branch
      %152 = sbr.rel (%p150) target = $region28
    $region27: #{tpu_custom_call.1} parent=5 // pred_region
      // Predicated region
      $region29: #{tpu_custom_call.1} parent=27 // pred_check
        %p153 = pneg %p30
      $region30: #{tpu_custom_call.1} parent=27 // pred_check_branch
        %155 = sbr.rel (%p153) target = $region32
      $region31: #{tpu_custom_call.1} parent=27 // pred_region
        %s156 = smul.u32 32, %s10
        %p157 = scmp.lt.s32.totalorder %s156, 63
        %s158 = scalar_select %p157, %s156, 63
        %s159 = smul.addr %s158, 8
        %s160 = scalar_lea.vmem %s0, %s159
        %s161 = smul.u32 32, %s10
      $region32: #{tpu_custom_call.1} parent=27 // pred_fallthru
        _
    $region28: #{tpu_custom_call.1} parent=5 // pred_fallthru
      _
    %p162 = scmp.le.s32.totalorder 1, %s10
    %p163 = scmp.lt.s32.totalorder %s10, 3
    %p164 = pnand %p162, %p163
    %p165 = pneg %p164
    // Predicated region
    $region33: #{tpu_custom_call.1} parent=5 // pred_check
      _
    $region34: #{tpu_custom_call.1} parent=5 // pred_check_branch
      %167 = sbr.rel (%p164) target = $region36
    $region35: #{tpu_custom_call.1} parent=5 // pred_region
      %s168 = ssub.s32 %s10, 1
      %s169 = smul.u32 32, %s15
      %p170 = scmp.lt.s32.totalorder %s169, 63
      %s171 = scalar_select %p170, %s169, 63
      %s172 = smul.addr %s171, 8
      %s173 = scalar_lea.vmem %s0, %s172
      %p174 = pneg %p36
      %p175 = pneg %p33
      %p176 = pneg %p57
      %p177 = pneg %p54
      %p178 = pneg %p78
      %p179 = pneg %p75
      %p180 = pneg %p99
      %p181 = pneg %p96
      %p182 = pneg %p125
      %p183 = pneg %p122
      %s184 = smul.u32 32, %s15
      %p185 = scmp.lt.s32.totalorder %s184, 63
      %s186 = scalar_select %p185, %s184, 63
      %s187 = smul.addr %s186, 8
      %s188 = scalar_lea.vmem %s4, %s187
      %s189 = smul.u32 32, %s15
      %p190 = scmp.lt.s32.totalorder %s189, 63
      %s191 = scalar_select %p190, %s189, 63
      %s192 = smul.addr %s191, 8
      %s193 = scalar_lea.vmem %s0, %s192
      %s194 = smul.u32 32, %s15
      %s195 = smul.u32 32, %s15
      %p196 = scmp.lt.s32.totalorder %s195, 63
      %s197 = scalar_select %p196, %s195, 63
      %s198 = smul.addr %s197, 8
      %s199 = scalar_lea.vmem %s4, %s198
      %s200 = smul.u32 32, %s15
      %v201 = vld [vmem:[%s193] sm:$0xff]
      %v202 = vld [vmem:[%s193 + $0x8] sm:$0xff]
      %v203 = vld [vmem:[%s193 + $0x10] sm:$0xff]
      %v204 = vld [vmem:[%s193 + $0x18] sm:$0xff]
      %v205 = vld [vmem:[%s193 + $0x20] sm:$0xff]
      %v206 = vld [vmem:[%s193 + $0x28] sm:$0xff]
      %v207 = vld [vmem:[%s193 + $0x30] sm:$0xff]
      %v208 = vld [vmem:[%s193 + $0x38] sm:$0xff]
      %v209 = vld [vmem:[%s193 + $0x40] sm:$0xff]
      %v210 = vld [vmem:[%s193 + $0x48] sm:$0xff]
      %v211 = vld [vmem:[%s193 + $0x50] sm:$0xff]
      %v212 = vld [vmem:[%s193 + $0x58] sm:$0xff]
      %v213 = vld [vmem:[%s193 + $0x60] sm:$0xff]
      %v214 = vld [vmem:[%s193 + $0x68] sm:$0xff]
      %v215 = vld [vmem:[%s193 + $0x70] sm:$0xff]
      %v216 = vld [vmem:[%s193 + $0x78] sm:$0xff]
      %v217 = vld [vmem:[%s193 + $0x80] sm:$0xff]
      %v218 = vld [vmem:[%s193 + $0x88] sm:$0xff]
      %v219 = vld [vmem:[%s193 + $0x90] sm:$0xff]
      %v220 = vld [vmem:[%s193 + $0x98] sm:$0xff]
      %v221 = vld [vmem:[%s193 + $0xa0] sm:$0xff]
      %v222 = vld [vmem:[%s193 + $0xa8] sm:$0xff]
      %v223 = vld [vmem:[%s193 + $0xb0] sm:$0xff]
      %v224 = vld [vmem:[%s193 + $0xb8] sm:$0xff]
      %v225 = vld [vmem:[%s193 + $0xc0] sm:$0xff]
      %v226 = vld [vmem:[%s193 + $0xc8] sm:$0xff]
      %v227 = vld [vmem:[%s193 + $0xd0] sm:$0xff]
      %v228 = vld [vmem:[%s193 + $0xd8] sm:$0xff]
      %v229 = vld [vmem:[%s193 + $0xe0] sm:$0xff]
      %v230 = vld [vmem:[%s193 + $0xe8] sm:$0xff]
      %v231 = vld [vmem:[%s193 + $0xf0] sm:$0xff]
      %v232 = vld [vmem:[%s193 + $0xf8] sm:$0xff]
      %v233 = vld [vmem:[%s1] sm:$0xf]
      %vm234 = vcmask 31744
      %v236 = vsel %vm234, %v201, 0
      %v239 = vsel %vm234, %v202, 0
      %v242 = vsel %vm234, %v203, 0
      %v245 = vsel %vm234, %v204, 0
      %v248 = vsel %vm234, %v205, 0
      %v251 = vsel %vm234, %v206, 0
      %v254 = vsel %vm234, %v207, 0
      %v257 = vsel %vm234, %v208, 0
      %v260 = vsel %vm234, %v209, 0
      %v263 = vsel %vm234, %v210, 0
      %v266 = vsel %vm234, %v211, 0
      %v269 = vsel %vm234, %v212, 0
      %v272 = vsel %vm234, %v213, 0
      %v275 = vsel %vm234, %v214, 0
      %v278 = vsel %vm234, %v215, 0
      %v281 = vsel %vm234, %v216, 0
      %v284 = vsel %vm234, %v217, 0
      %v287 = vsel %vm234, %v218, 0
      %v290 = vsel %vm234, %v219, 0
      %v293 = vsel %vm234, %v220, 0
      %v296 = vsel %vm234, %v221, 0
      %v299 = vsel %vm234, %v222, 0
      %v302 = vsel %vm234, %v223, 0
      %v305 = vsel %vm234, %v224, 0
      %v308 = vsel %vm234, %v225, 0
      %v311 = vsel %vm234, %v226, 0
      %v314 = vsel %vm234, %v227, 0
      %v317 = vsel %vm234, %v228, 0
      %v320 = vsel %vm234, %v229, 0
      %v323 = vsel %vm234, %v230, 0
      %v326 = vsel %vm234, %v231, 0
      %v329 = vsel %vm234, %v232, 0
      %vm331 = vcmask 1043456
      %v333 = vsel %vm331, %v233, 0
      %335 = vmatprep.subr.mxu0 0.0
      %336 = vmatpush1.msra.mxu0 %v333
      %337 = vmatprep.subr.mxu0 0.0
      %338 = vmatpush1.msra.mxu0 0.0
      %339 = vmatprep.subr.mxu0 0.0
      %340 = vmatpush1.msra.mxu0 0.0
      %341 = vmatprep.subr.mxu0 0.0
      %342 = vmatpush1.msra.mxu0 0.0
      %343 = vmatprep.subr.mxu0 0.0
      %344 = vmatpush1.msra.mxu0 0.0
      %345 = vmatprep.subr.mxu0 0.0
      %346 = vmatpush1.msra.mxu0 0.0
      %347 = vmatprep.subr.mxu0 0.0
      %348 = vmatpush1.msra.mxu0 0.0
      %349 = vmatprep.subr.mxu0 0.0
      %350 = vmatpush1.msra.mxu0 0.0
      %351 = vmatprep.subr.mxu0 0.0
      %352 = vmatpush1.msra.mxu0 0.0
      %353 = vmatprep.subr.mxu0 0.0
      %354 = vmatpush1.msra.mxu0 0.0
      %355 = vmatprep.subr.mxu0 0.0
      %356 = vmatpush1.msra.mxu0 0.0
      %357 = vmatprep.subr.mxu0 0.0
      %358 = vmatpush1.msra.mxu0 0.0
      %359 = vmatprep.subr.mxu0 0.0
      %360 = vmatpush1.msra.mxu0 0.0
      %361 = vmatprep.subr.mxu0 0.0
      %362 = vmatpush1.msra.mxu0 0.0
      %363 = vmatprep.subr.mxu0 0.0
      %364 = vmatpush1.msra.mxu0 0.0
      %365 = vmatprep.subr.mxu0 0.0
      %366 = vmatpush1.msra.mxu0 0.0
      %367 = vmatprep.subr.mxu0 0.0
      %368 = vmatpush1.msra.mxu0 0.0
      %369 = vmatprep.subr.mxu0 0.0
      %370 = vmatpush1.msra.mxu0 0.0
      %371 = vmatprep.subr.mxu0 0.0
      %372 = vmatpush1.msra.mxu0 0.0
      %373 = vmatprep.subr.mxu0 0.0
      %374 = vmatpush1.msra.mxu0 0.0
      %375 = vmatprep.subr.mxu0 0.0
      %376 = vmatpush1.msra.mxu0 0.0
      %377 = vmatprep.subr.mxu0 0.0
      %378 = vmatpush1.msra.mxu0 0.0
      %379 = vmatprep.subr.mxu0 0.0
      %380 = vmatpush1.msra.mxu0 0.0
      %381 = vmatprep.subr.mxu0 0.0
      %382 = vmatpush1.msra.mxu0 0.0
      %383 = vmatprep.subr.mxu0 0.0
      %384 = vmatpush1.msra.mxu0 0.0
      %385 = vmatprep.subr.mxu0 0.0
      %386 = vmatpush1.msra.mxu0 0.0
      %387 = vmatprep.subr.mxu0 0.0
      %388 = vmatpush1.msra.mxu0 0.0
      %389 = vmatprep.subr.mxu0 0.0
      %390 = vmatpush1.msra.mxu0 0.0
      %391 = vmatprep.subr.mxu0 0.0
      %392 = vmatpush1.msra.mxu0 0.0
      %393 = vmatprep.subr.mxu0 0.0
      %394 = vmatpush1.msra.mxu0 0.0
      %395 = vmatprep.subr.mxu0 0.0
      %396 = vmatpush1.msra.mxu0 0.0
      %397 = vmatprep.subr.mxu0 0.0
      %398 = vmatpush1.msra.mxu0 0.0
      %399 = vmatprep.mubr.f32.mxu0 0.0
      %400 = vmatmul.mubr.f32.gmra.mrb[0].mxu0 %v236
      %v401 = vpop.f32.mrb[0].mxu0
      %v402 = vadd.f32 0.0, %v401
      %v403 = vpop.f32.mrb[0].mxu0
      %404 = vmatprep.mubr.f32.mxu0 0.0
      %405 = vmatmul.mubr.f32.gmra.mrb[0].mxu0 %v239
      %v406 = vpop.f32.mrb[0].mxu0
      %v407 = vadd.f32 0.0, %v406
      %v408 = vpop.f32.mrb[0].mxu0
      %409 = vmatprep.mubr.f32.mxu0 0.0
      %410 = vmatmul.mubr.f32.gmra.mrb[0].mxu0 %v242
      %v411 = vpop.f32.mrb[0].mxu0
      %v412 = vadd.f32 0.0, %v411
      %v413 = vpop.f32.mrb[0].mxu0
      %414 = vmatprep.mubr.f32.mxu0 0.0
      %415 = vmatmul.mubr.f32.gmra.mrb[0].mxu0 %v245
      %v416 = vpop.f32.mrb[0].mxu0
      %v417 = vadd.f32 0.0, %v416
      %v418 = vpop.f32.mrb[0].mxu0
      %419 = vmatprep.mubr.f32.mxu0 0.0
      %420 = vmatmul.mubr.f32.gmra.mrb[0].mxu0 %v248
      %v421 = vpop.f32.mrb[0].mxu0
      %v422 = vadd.f32 0.0, %v421
      %v423 = vpop.f32.mrb[0].mxu0
      %424 = vmatprep.mubr.f32.mxu0 0.0
      %425 = vmatmul.mubr.f32.gmra.mrb[0].mxu0 %v251
      %v426 = vpop.f32.mrb[0].mxu0
      %v427 = vadd.f32 0.0, %v426
      %v428 = vpop.f32.mrb[0].mxu0
      %429 = vmatprep.mubr.f32.mxu0 0.0
      %430 = vmatmul.mubr.f32.gmra.mrb[0].mxu0 %v254
      %v431 = vpop.f32.mrb[0].mxu0
      %v432 = vadd.f32 0.0, %v431
      %v433 = vpop.f32.mrb[0].mxu0
      %434 = vmatprep.mubr.f32.mxu0 0.0
      %435 = vmatmul.mubr.f32.gmra.mrb[0].mxu0 %v257
      %v436 = vpop.f32.mrb[0].mxu0
      %v437 = vadd.f32 0.0, %v436
      %v438 = vpop.f32.mrb[0].mxu0
      %439 = vmatprep.mubr.f32.mxu0 0.0
      %440 = vmatmul.mubr.f32.gmra.mrb[0].mxu0 %v260
      %v441 = vpop.f32.mrb[0].mxu0
      %v442 = vadd.f32 0.0, %v441
      %v443 = vpop.f32.mrb[0].mxu0
      %444 = vmatprep.mubr.f32.mxu0 0.0
      %445 = vmatmul.mubr.f32.gmra.mrb[0].mxu0 %v263
      %v446 = vpop.f32.mrb[0].mxu0
      %v447 = vadd.f32 0.0, %v446
      %v448 = vpop.f32.mrb[0].mxu0
      %449 = vmatprep.mubr.f32.mxu0 0.0
      %450 = vmatmul.mubr.f32.gmra.mrb[0].mxu0 %v266
      %v451 = vpop.f32.mrb[0].mxu0
      %v452 = vadd.f32 0.0, %v451
      %v453 = vpop.f32.mrb[0].mxu0
      %454 = vmatprep.mubr.f32.mxu0 0.0
      %455 = vmatmul.mubr.f32.gmra.mrb[0].mxu0 %v269
      %v456 = vpop.f32.mrb[0].mxu0
      %v457 = vadd.f32 0.0, %v456
      %v458 = vpop.f32.mrb[0].mxu0
      %459 = vmatprep.mubr.f32.mxu0 0.0
      %460 = vmatmul.mubr.f32.gmra.mrb[0].mxu0 %v272
      %v461 = vpop.f32.mrb[0].mxu0
      %v462 = vadd.f32 0.0, %v461
      %v463 = vpop.f32.mrb[0].mxu0
      %464 = vmatprep.mubr.f32.mxu0 0.0
      %465 = vmatmul.mubr.f32.gmra.mrb[0].mxu0 %v275
      %v466 = vpop.f32.mrb[0].mxu0
      %v467 = vadd.f32 0.0, %v466
      %v468 = vpop.f32.mrb[0].mxu0
      %469 = vmatprep.mubr.f32.mxu0 0.0
      %470 = vmatmul.mubr.f32.gmra.mrb[0].mxu0 %v278
      %v471 = vpop.f32.mrb[0].mxu0
      %v472 = vadd.f32 0.0, %v471
      %v473 = vpop.f32.mrb[0].mxu0
      %474 = vmatprep.mubr.f32.mxu0 0.0
      %475 = vmatmul.mubr.f32.gmra.mrb[0].mxu0 %v281
      %v476 = vpop.f32.mrb[0].mxu0
      %v477 = vadd.f32 0.0, %v476
      %v478 = vpop.f32.mrb[0].mxu0
      %479 = vmatprep.mubr.f32.mxu0 0.0
      %480 = vmatmul.mubr.f32.gmra.mrb[0].mxu0 %v284
      %v481 = vpop.f32.mrb[0].mxu0
      %v482 = vadd.f32 0.0, %v481
      %v483 = vpop.f32.mrb[0].mxu0
      %484 = vmatprep.mubr.f32.mxu0 0.0
      %485 = vmatmul.mubr.f32.gmra.mrb[0].mxu0 %v287
      %v486 = vpop.f32.mrb[0].mxu0
      %v487 = vadd.f32 0.0, %v486
      %v488 = vpop.f32.mrb[0].mxu0
      %489 = vmatprep.mubr.f32.mxu0 0.0
      %490 = vmatmul.mubr.f32.gmra.mrb[0].mxu0 %v290
      %v491 = vpop.f32.mrb[0].mxu0
      %v492 = vadd.f32 0.0, %v491
      %v493 = vpop.f32.mrb[0].mxu0
      %494 = vmatprep.mubr.f32.mxu0 0.0
      %495 = vmatmul.mubr.f32.gmra.mrb[0].mxu0 %v293
      %v496 = vpop.f32.mrb[0].mxu0
      %v497 = vadd.f32 0.0, %v496
      %v498 = vpop.f32.mrb[0].mxu0
      %499 = vmatprep.mubr.f32.mxu0 0.0
      %500 = vmatmul.mubr.f32.gmra.mrb[0].mxu0 %v296
      %v501 = vpop.f32.mrb[0].mxu0
      %v502 = vadd.f32 0.0, %v501
      %v503 = vpop.f32.mrb[0].mxu0
      %504 = vmatprep.mubr.f32.mxu0 0.0
      %505 = vmatmul.mubr.f32.gmra.mrb[0].mxu0 %v299
      %v506 = vpop.f32.mrb[0].mxu0
      %v507 = vadd.f32 0.0, %v506
      %v508 = vpop.f32.mrb[0].mxu0
      %509 = vmatprep.mubr.f32.mxu0 0.0
      %510 = vmatmul.mubr.f32.gmra.mrb[0].mxu0 %v302
      %v511 = vpop.f32.mrb[0].mxu0
      %v512 = vadd.f32 0.0, %v511
      %v513 = vpop.f32.mrb[0].mxu0
      %514 = vmatprep.mubr.f32.mxu0 0.0
      %515 = vmatmul.mubr.f32.gmra.mrb[0].mxu0 %v305
      %v516 = vpop.f32.mrb[0].mxu0
      %v517 = vadd.f32 0.0, %v516
      %v518 = vpop.f32.mrb[0].mxu0
      %519 = vmatprep.mubr.f32.mxu0 0.0
      %520 = vmatmul.mubr.f32.gmra.mrb[0].mxu0 %v308
      %v521 = vpop.f32.mrb[0].mxu0
      %v522 = vadd.f32 0.0, %v521
      %v523 = vpop.f32.mrb[0].mxu0
      %524 = vmatprep.mubr.f32.mxu0 0.0
      %525 = vmatmul.mubr.f32.gmra.mrb[0].mxu0 %v311
      %v526 = vpop.f32.mrb[0].mxu0
      %v527 = vadd.f32 0.0, %v526
      %v528 = vpop.f32.mrb[0].mxu0
      %529 = vmatprep.mubr.f32.mxu0 0.0
      %530 = vmatmul.mubr.f32.gmra.mrb[0].mxu0 %v314
      %v531 = vpop.f32.mrb[0].mxu0
      %v532 = vadd.f32 0.0, %v531
      %v533 = vpop.f32.mrb[0].mxu0
      %534 = vmatprep.mubr.f32.mxu0 0.0
      %535 = vmatmul.mubr.f32.gmra.mrb[0].mxu0 %v317
      %v536 = vpop.f32.mrb[0].mxu0
      %v537 = vadd.f32 0.0, %v536
      %v538 = vpop.f32.mrb[0].mxu0
      %539 = vmatprep.mubr.f32.mxu0 0.0
      %540 = vmatmul.mubr.f32.gmra.mrb[0].mxu0 %v320
      %v541 = vpop.f32.mrb[0].mxu0
      %v542 = vadd.f32 0.0, %v541
      %v543 = vpop.f32.mrb[0].mxu0
      %544 = vmatprep.mubr.f32.mxu0 0.0
      %545 = vmatmul.mubr.f32.gmra.mrb[0].mxu0 %v323
      %v546 = vpop.f32.mrb[0].mxu0
      %v547 = vadd.f32 0.0, %v546
      %v548 = vpop.f32.mrb[0].mxu0
      %549 = vmatprep.mubr.f32.mxu0 0.0
      %550 = vmatmul.mubr.f32.gmra.mrb[0].mxu0 %v326
      %v551 = vpop.f32.mrb[0].mxu0
      %v552 = vadd.f32 0.0, %v551
      %v553 = vpop.f32.mrb[0].mxu0
      %554 = vmatprep.mubr.f32.mxu0 0.0
      %555 = vmatmul.mubr.f32.gmra.mrb[0].mxu0 %v329
      %v556 = vpop.f32.mrb[0].mxu0
      %v557 = vadd.f32 0.0, %v556
      %v558 = vpop.f32.mrb[0].mxu0
      %559 = vdwg.mxu0
      %v560 = vld [vmem:[%s2] sm:$0x1]
      %v562 = vlaneseq
      %v563 = vshrl.u32 %v562, 7
      %v564 = vsub.s32 0, %v563
      %v565 = vrot.slane %v560, %v564
      %v567 = vmul.f32 %v402, %v565
      %v568 = vmul.f32 %v407, %v565
      %v569 = vmul.f32 %v412, %v565
      %v570 = vmul.f32 %v417, %v565
      %v571 = vmul.f32 %v422, %v565
      %v572 = vmul.f32 %v427, %v565
      %v573 = vmul.f32 %v432, %v565
      %v574 = vmul.f32 %v437, %v565
      %v575 = vmul.f32 %v442, %v565
      %v576 = vmul.f32 %v447, %v565
      %v577 = vmul.f32 %v452, %v565
      %v578 = vmul.f32 %v457, %v565
      %v579 = vmul.f32 %v462, %v565
      %v580 = vmul.f32 %v467, %v565
      %v581 = vmul.f32 %v472, %v565
      %v582 = vmul.f32 %v477, %v565
      %v583 = vmul.f32 %v482, %v565
      %v584 = vmul.f32 %v487, %v565
      %v585 = vmul.f32 %v492, %v565
      %v586 = vmul.f32 %v497, %v565
      %v587 = vmul.f32 %v502, %v565
      %v588 = vmul.f32 %v507, %v565
      %v589 = vmul.f32 %v512, %v565
      %v590 = vmul.f32 %v517, %v565
      %v591 = vmul.f32 %v522, %v565
      %v592 = vmul.f32 %v527, %v565
      %v593 = vmul.f32 %v532, %v565
      %v594 = vmul.f32 %v537, %v565
      %v595 = vmul.f32 %v542, %v565
      %v596 = vmul.f32 %v547, %v565
      %v597 = vmul.f32 %v552, %v565
      %v598 = vmul.f32 %v557, %v565
      %v599 = vld [vmem:[%s3] sm:$0x1]
      %v601 = vlaneseq
      %v602 = vshrl.u32 %v601, 7
      %v603 = vsub.s32 0, %v602
      %v604 = vrot.slane %v599, %v603
      %v606 = vadd.f32 %v567, %v604
      %v607 = vadd.f32 %v568, %v604
      %v608 = vadd.f32 %v569, %v604
      %v609 = vadd.f32 %v570, %v604
      %v610 = vadd.f32 %v571, %v604
      %v611 = vadd.f32 %v572, %v604
      %v612 = vadd.f32 %v573, %v604
      %v613 = vadd.f32 %v574, %v604
      %v614 = vadd.f32 %v575, %v604
      %v615 = vadd.f32 %v576, %v604
      %v616 = vadd.f32 %v577, %v604
      %v617 = vadd.f32 %v578, %v604
      %v618 = vadd.f32 %v579, %v604
      %v619 = vadd.f32 %v580, %v604
      %v620 = vadd.f32 %v581, %v604
      %v621 = vadd.f32 %v582, %v604
      %v622 = vadd.f32 %v583, %v604
      %v623 = vadd.f32 %v584, %v604
      %v624 = vadd.f32 %v585, %v604
      %v625 = vadd.f32 %v586, %v604
      %v626 = vadd.f32 %v587, %v604
      %v627 = vadd.f32 %v588, %v604
      %v628 = vadd.f32 %v589, %v604
      %v629 = vadd.f32 %v590, %v604
      %v630 = vadd.f32 %v591, %v604
      %v631 = vadd.f32 %v592, %v604
      %v632 = vadd.f32 %v593, %v604
      %v633 = vadd.f32 %v594, %v604
      %v634 = vadd.f32 %v595, %v604
      %v635 = vadd.f32 %v596, %v604
      %v636 = vadd.f32 %v597, %v604
      %v637 = vadd.f32 %v598, %v604
      %v638 = vmax.f32 %v606, 0.0
      %v639 = vmax.f32 %v607, 0.0
      %v640 = vmax.f32 %v608, 0.0
      %v641 = vmax.f32 %v609, 0.0
      %v642 = vmax.f32 %v610, 0.0
      %v643 = vmax.f32 %v611, 0.0
      %v644 = vmax.f32 %v612, 0.0
      %v645 = vmax.f32 %v613, 0.0
      %v646 = vmax.f32 %v614, 0.0
      %v647 = vmax.f32 %v615, 0.0
      %v648 = vmax.f32 %v616, 0.0
      %v649 = vmax.f32 %v617, 0.0
      %v650 = vmax.f32 %v618, 0.0
      %v651 = vmax.f32 %v619, 0.0
      %v652 = vmax.f32 %v620, 0.0
      %v653 = vmax.f32 %v621, 0.0
      %v654 = vmax.f32 %v622, 0.0
      %v655 = vmax.f32 %v623, 0.0
      %v656 = vmax.f32 %v624, 0.0
      %v657 = vmax.f32 %v625, 0.0
      %v658 = vmax.f32 %v626, 0.0
      %v659 = vmax.f32 %v627, 0.0
      %v660 = vmax.f32 %v628, 0.0
      %v661 = vmax.f32 %v629, 0.0
      %v662 = vmax.f32 %v630, 0.0
      %v663 = vmax.f32 %v631, 0.0
      %v664 = vmax.f32 %v632, 0.0
      %v665 = vmax.f32 %v633, 0.0
      %v666 = vmax.f32 %v634, 0.0
      %v667 = vmax.f32 %v635, 0.0
      %v668 = vmax.f32 %v636, 0.0
      %v669 = vmax.f32 %v637, 0.0
      %vm670 = vcmask 64512
      %671 = vst.msk [vmem:[%s199] sm:$0xff] %vm670, %v638
      %672 = vst.msk [vmem:[%s199 + $0x8] sm:$0xff] %vm670, %v639
      %673 = vst.msk [vmem:[%s199 + $0x10] sm:$0xff] %vm670, %v640
      %674 = vst.msk [vmem:[%s199 + $0x18] sm:$0xff] %vm670, %v641
      %675 = vst.msk [vmem:[%s199 + $0x20] sm:$0xff] %vm670, %v642
      %676 = vst.msk [vmem:[%s199 + $0x28] sm:$0xff] %vm670, %v643
      %677 = vst.msk [vmem:[%s199 + $0x30] sm:$0xff] %vm670, %v644
      %678 = vst.msk [vmem:[%s199 + $0x38] sm:$0xff] %vm670, %v645
      %679 = vst.msk [vmem:[%s199 + $0x40] sm:$0xff] %vm670, %v646
      %680 = vst.msk [vmem:[%s199 + $0x48] sm:$0xff] %vm670, %v647
      %681 = vst.msk [vmem:[%s199 + $0x50] sm:$0xff] %vm670, %v648
      %682 = vst.msk [vmem:[%s199 + $0x58] sm:$0xff] %vm670, %v649
      %683 = vst.msk [vmem:[%s199 + $0x60] sm:$0xff] %vm670, %v650
      %684 = vst.msk [vmem:[%s199 + $0x68] sm:$0xff] %vm670, %v651
      %685 = vst.msk [vmem:[%s199 + $0x70] sm:$0xff] %vm670, %v652
      %686 = vst.msk [vmem:[%s199 + $0x78] sm:$0xff] %vm670, %v653
      %687 = vst.msk [vmem:[%s199 + $0x80] sm:$0xff] %vm670, %v654
      %688 = vst.msk [vmem:[%s199 + $0x88] sm:$0xff] %vm670, %v655
      %689 = vst.msk [vmem:[%s199 + $0x90] sm:$0xff] %vm670, %v656
      %690 = vst.msk [vmem:[%s199 + $0x98] sm:$0xff] %vm670, %v657
      %691 = vst.msk [vmem:[%s199 + $0xa0] sm:$0xff] %vm670, %v658
      %692 = vst.msk [vmem:[%s199 + $0xa8] sm:$0xff] %vm670, %v659
      %693 = vst.msk [vmem:[%s199 + $0xb0] sm:$0xff] %vm670, %v660
      %694 = vst.msk [vmem:[%s199 + $0xb8] sm:$0xff] %vm670, %v661
      %695 = vst.msk [vmem:[%s199 + $0xc0] sm:$0xff] %vm670, %v662
      %696 = vst.msk [vmem:[%s199 + $0xc8] sm:$0xff] %vm670, %v663
      %697 = vst.msk [vmem:[%s199 + $0xd0] sm:$0xff] %vm670, %v664
      %698 = vst.msk [vmem:[%s199 + $0xd8] sm:$0xff] %vm670, %v665
      %699 = vst.msk [vmem:[%s199 + $0xe0] sm:$0xff] %vm670, %v666
      %700 = vst.msk [vmem:[%s199 + $0xe8] sm:$0xff] %vm670, %v667
      %701 = vst.msk [vmem:[%s199 + $0xf0] sm:$0xff] %vm670, %v668
      %702 = vst.msk [vmem:[%s199 + $0xf8] sm:$0xff] %vm670, %v669
      %s703 = smul.u32 32, %s15
      %p704 = scmp.lt.s32.totalorder %s703, 63
      %s705 = scalar_select %p704, %s703, 63
      %s706 = smul.addr %s705, 8
      %s707 = scalar_lea.vmem %s4, %s706
      // Predicated region
      $region37: #{tpu_custom_call.1} parent=35 // pred_check
        %p708 = pneg %p122
      $region38: #{tpu_custom_call.1} parent=35 // pred_check_branch
        %710 = sbr.rel (%p708) target = $region40
      $region39: #{tpu_custom_call.1} parent=35 // pred_region
        %s711 = smul.u32 32, %s15
      $region40: #{tpu_custom_call.1} parent=35 // pred_fallthru
        _
    $region36: #{tpu_custom_call.1} parent=5 // pred_fallthru
      _
    %p712 = scmp.le.s32.totalorder 2, %s10
    // Predicated region
    $region41: #{tpu_custom_call.1} parent=5 // pred_check
      %p713 = pneg %p712
    $region42: #{tpu_custom_call.1} parent=5 // pred_check_branch
      %715 = sbr.rel (%p713) target = $region44
    $region43: #{tpu_custom_call.1} parent=5 // pred_region
      %s716 = ssub.s32 %s10, 2
      // Predicated region
      $region45: #{tpu_custom_call.1} parent=43 // pred_check
        %p717 = pneg %p128
      $region46: #{tpu_custom_call.1} parent=43 // pred_check_branch
        %719 = sbr.rel (%p717) target = $region48
      $region47: #{tpu_custom_call.1} parent=43 // pred_region
        %s720 = smul.u32 32, %s16
        %p721 = scmp.lt.s32.totalorder %s720, 63
        %s722 = scalar_select %p721, %s720, 63
        %s723 = smul.addr %s722, 8
        %s724 = scalar_lea.vmem %s4, %s723
      $region48: #{tpu_custom_call.1} parent=43 // pred_fallthru
        _
    $region44: #{tpu_custom_call.1} parent=5 // pred_fallthru
      _
  $region6: #{tpu_custom_call.1} parent=0 // loop_footer
    %s14 = sadd.s32 1, %s10
  $region7: #{tpu_custom_call.1} parent=0 // loop_footer_branch
    %9 = sbr.rel target = $region3
  $region8: #{tpu_custom_call.1} parent=0 // loop_exit
    _

</llo_original>
